<compile_context>
chip_gen: v7x
topology: tpu7x:2x2x1
jax: 0.10.0
libtpu: 0.0.40
codegen_flags: <defaults>
</compile_context>

<pallas_src>
import math
import functools

import jax
import jax.numpy as jnp
from jax.experimental import pallas as pl
from jax.experimental.pallas import tpu as pltpu


def _round_up(x, m):
    return (x + m - 1) // m * m


def _vmem_capacity_bytes():
    # Per-TensorCore VMEM capacity; conservative default (v7x: 64 MiB) if unavailable.
    try:
        cap = getattr(pltpu.get_tpu_info(), "vmem_capacity_bytes", None)
        if cap:
            return int(cap)
    except Exception:
        pass
    return 64 << 20


# ---------------------------------------------------------------------------
# Path 1: small vocab -- one-hot matmul on the MXU, vocab-chunked accumulation.
# ---------------------------------------------------------------------------

def _onehot_kernel(ids_ref, emb_ref, out_ref, acc_ref, *, scale):
    # ids_ref : VMEM (tb, 1)           int32  token ids for this block
    # emb_ref : VMEM (voc_chunk, d_p)  table dtype, streamed vocab chunk k
    # out_ref : VMEM (tb, d_p)         table dtype, resident across k
    # acc_ref : VMEM (tb, d_p)         f32 scratch accumulator
    k = pl.program_id(1)

    @pl.when(k == 0)
    def _init():
        acc_ref[...] = jnp.zeros_like(acc_ref)

    tb = out_ref.shape[0]
    voc_chunk = emb_ref.shape[0]
    ids = ids_ref[...]                                                    # (tb, 1)
    cols = k * voc_chunk + jax.lax.broadcasted_iota(jnp.int32, (tb, voc_chunk), 1)
    # 0/1 values are exact in any float dtype; a bf16 table gives full bf16 MXU rate.
    onehot = (ids == cols).astype(emb_ref.dtype)
    acc_ref[...] += jnp.dot(onehot, emb_ref[...], preferred_element_type=jnp.float32)

    @pl.when(k == pl.num_programs(1) - 1)
    def _finalize():
        out_ref[...] = (acc_ref[...] * scale).astype(out_ref.dtype)


def _embed_onehot(flat_ids, emb_table, n, scale, vmem_cap):
    voc, d = emb_table.shape
    itemsize = jnp.dtype(emb_table.dtype).itemsize
    d_p = _round_up(d, 128)
    voc_p = _round_up(voc, 128)
    budget = max(vmem_cap - (10 << 20), 16 << 20)   # headroom for Mosaic scratch

    # Vocab chunk: <= 1024 rows, shrink until the double-buffered chunk is a small
    # fraction of the budget.
    voc_chunk = min(voc_p, 1024)
    while voc_chunk > 128 and 2 * voc_chunk * d_p * itemsize > budget // 3:
        voc_chunk //= 2
    voc_chunk = max(voc_chunk, 128)

    def vmem_needed(tb):
        return (2 * tb * 128 * 4                   # ids tiles (lane-padded, dbl-buf)
                + 2 * voc_chunk * d_p * itemsize   # streamed table chunk (dbl-buf)
                + 2 * tb * d_p * itemsize          # output tiles (dbl-buf)
                + tb * d_p * 4                     # f32 accumulator scratch
                + tb * voc_chunk * itemsize)       # materialized one-hot

    tb_cap = _round_up(n, 128)
    tb = min(128, tb_cap)
    for cand in (1024, 512, 256, 128):             # big tiles amortize per-step cost
        cand = min(cand, tb_cap)
        if vmem_needed(cand) <= budget:
            tb = cand
            break

    voc_pp = _round_up(voc_p, voc_chunk)           # grid-divisible vocab padding
    n_p = _round_up(n, tb)

    emb_p = emb_table
    if (voc_pp, d_p) != (voc, d):
        emb_p = jnp.pad(emb_table, ((0, voc_pp - voc), (0, d_p - d)))
    ids_p = flat_ids if n_p == n else jnp.pad(flat_ids, (0, n_p - n))
    ids2d = ids_p.reshape(n_p, 1)

    vmem_limit = int(min(max(vmem_needed(tb) + (6 << 20), 32 << 20),
                         vmem_cap - (8 << 20)))

    out = pl.pallas_call(
        functools.partial(_onehot_kernel, scale=scale),
        out_shape=jax.ShapeDtypeStruct((n_p, d_p), emb_table.dtype),
        grid_spec=pltpu.PrefetchScalarGridSpec(
            num_scalar_prefetch=0,
            grid=(n_p // tb, voc_pp // voc_chunk),
            in_specs=[
                pl.BlockSpec((tb, 1), lambda i, k: (i, 0)),         # per-block ids
                pl.BlockSpec((voc_chunk, d_p), lambda i, k: (k, 0)),  # streamed table
            ],
            out_specs=pl.BlockSpec((tb, d_p), lambda i, k: (i, 0)),
            scratch_shapes=[pltpu.VMEM((tb, d_p), jnp.float32)],
        ),
        compiler_params=pltpu.CompilerParams(
            dimension_semantics=("parallel", "arbitrary"),
            vmem_limit_bytes=vmem_limit,
        ),
    )(ids2d, emb_p)
    return out[:n, :d]


# ---------------------------------------------------------------------------
# Path 2: large vocab -- scalar-prefetched ids + HBM-resident table, row DMA gather.
# ---------------------------------------------------------------------------

def _gather_kernel(ids_ref, table_ref, out_ref, rows_ref, sem, *, scale, voc):
    # ids_ref   : SMEM (n_p,) int32    all (padded) token ids (scalar-prefetched)
    # table_ref : HBM  (voc, d_p)      full embedding table (memory_space=pl.ANY)
    # out_ref   : VMEM (tb, d_p)       this block's output tile
    # rows_ref  : VMEM (tb, d_p)       DMA staging tile
    # sem       : DMA semaphore array (1,), shared by the per-row copies
    tb, _ = out_ref.shape
    base = pl.program_id(0) * tb

    @pl.loop(0, tb)
    def _start(t):
        row = ids_ref[base + t]
        row = jnp.clip(row, 0, voc - 1)   # keep garbage/pad ids from faulting the DMA
        pltpu.make_async_copy(table_ref.at[pl.ds(row, 1), :],
                              rows_ref.at[pl.ds(t, 1), :], sem.at[0]).start()

    @pl.loop(0, tb)
    def _wait(t):
        pltpu.make_async_copy(table_ref.at[pl.ds(0, 1), :],
                              rows_ref.at[pl.ds(t, 1), :], sem.at[0]).wait()

    out_ref[...] = (rows_ref[...].astype(jnp.float32) * scale).astype(out_ref.dtype)


def _embed_gather(flat_ids, emb_table, n, scale, vmem_cap):
    voc, d = emb_table.shape
    itemsize = jnp.dtype(emb_table.dtype).itemsize
    d_p = _round_up(d, 128)
    budget = max(vmem_cap - (10 << 20), 16 << 20)

    tb_cap = _round_up(n, 128)
    tb = min(128, tb_cap)
    for cand in (512, 256, 128):
        cand = min(cand, tb_cap)
        if 3 * cand * d_p * itemsize + (1 << 20) <= budget:
            tb = cand
            break
    n_p = _round_up(n, tb)

    emb_p = emb_table if d_p == d else jnp.pad(emb_table, ((0, 0), (0, d_p - d)))
    ids_p = flat_ids if n_p == n else jnp.pad(flat_ids, (0, n_p - n))
    # TODO(synk): for very long sequences the whole id vector lives in SMEM; switch
    # to per-block id tiles if n reaches hundreds of thousands of tokens.

    needed = 3 * tb * d_p * itemsize
    vmem_limit = int(min(max(needed + (6 << 20), 32 << 20), vmem_cap - (8 << 20)))

    out = pl.pallas_call(
        functools.partial(_gather_kernel, scale=scale, voc=voc),
        out_shape=jax.ShapeDtypeStruct((n_p, d_p), emb_table.dtype),
        grid_spec=pltpu.PrefetchScalarGridSpec(
            num_scalar_prefetch=1,                             # ids -> SMEM
            grid=(n_p // tb,),
            in_specs=[pl.BlockSpec(memory_space=pl.ANY)],      # table stays in HBM
            out_specs=pl.BlockSpec((tb, d_p), lambda i, ids: (i, 0)),
            scratch_shapes=[
                pltpu.VMEM((tb, d_p), emb_table.dtype),
                pltpu.SemaphoreType.DMA((1,)),
            ],
        ),
        compiler_params=pltpu.CompilerParams(
            dimension_semantics=("parallel",),
            vmem_limit_bytes=vmem_limit,
        ),
    )(ids_p, emb_p)
    return out[:n, :d]


# ---------------------------------------------------------------------------
# Public wrapper.
# ---------------------------------------------------------------------------

def input_embeddings(ids, emb_table, *, gather_threshold=2048):
    """Pallas equivalent of `nn.Embedding(voc, d_model)(ids) * sqrt(d_model)`."""
    B, S = ids.shape
    voc, d = emb_table.shape
    n = B * S
    scale = math.sqrt(float(d))
    flat_ids = ids.reshape(n).astype(jnp.int32)
    vmem_cap = _vmem_capacity_bytes()

    if voc <= gather_threshold:
        out = _embed_onehot(flat_ids, emb_table, n, scale, vmem_cap)
    else:
        out = _embed_gather(flat_ids, emb_table, n, scale, vmem_cap)
    return out.reshape(B, S, d)


if __name__ == "__main__":
    d_model = 32
    voc_size = 64
    B, S = 2, 8

    key = jax.random.PRNGKey(0)
    k_emb, k_ids = jax.random.split(key)

    # Synthetic "nn.Embedding" weights (N(0,1), like the PyTorch default).
    emb_table = jax.random.normal(k_emb, (voc_size, d_model), dtype=jnp.float32)
    ids = jax.random.randint(k_ids, (B, S), 0, voc_size, dtype=jnp.int32)

    # Reference: plain JAX gather * sqrt(d_model).
    ref = jnp.take(emb_table, ids, axis=0) * math.sqrt(d_model)

    # Small-vocab path (one-hot matmul, vocab-chunked accumulation).
    out = jax.block_until_ready(input_embeddings(ids, emb_table))
    assert out.shape == (B, S, d_model)
    assert jnp.allclose(out, ref, atol=1e-5, rtol=1e-5)

    # Force the large-vocab path (SMEM ids + HBM table + DMA row gather) on the
    # same small inputs to validate it as well.
    out_g = jax.block_until_ready(input_embeddings(ids, emb_table, gather_threshold=0))
    assert out_g.shape == (B, S, d_model)
    assert jnp.allclose(out_g, ref, atol=1e-5, rtol=1e-5)

    print("KERNEL_OK")
</pallas_src>

<mosaic_0001>
module attributes {stable_mosaic.version = 11 : i64} {
  func.func @_onehot_kernel(%arg0: i32, %arg1: i32, %arg2: memref<128x1xi32, #tpu.memory_space<vmem>>, %arg3: memref<128x128xf32, #tpu.memory_space<vmem>>, %arg4: memref<128x128xf32, #tpu.memory_space<vmem>>, %arg5: memref<128x128xf32, #tpu.memory_space<vmem>>) attributes {dimension_semantics = [#tpu.dimension_semantics<parallel>, #tpu.dimension_semantics<arbitrary>], iteration_bounds = array<i64: 1, 1>, scalar_prefetch = 0 : i64, scratch_operands = 1 : i64, tpu.core_type = #tpu.core_type<tc>, window_params = [{transform_indices = @transform_0, window_bounds = array<i64: 128, 1>}, {transform_indices = @transform_1, window_bounds = array<i64: 128, 128>}, {transform_indices = @transform_2, window_bounds = array<i64: 128, 128>}]} {
    %c0_i32 = arith.constant 0 : i32
    %0 = arith.cmpi eq, %arg1, %c0_i32 : i32
    %1 = arith.extui %0 : i1 to i32
    %c0_i32_0 = arith.constant 0 : i32
    %2 = arith.cmpi ne, %1, %c0_i32_0 : i32
    scf.if %2 {
      %cst_10 = arith.constant 0.000000e+00 : f32
      %20 = vector.broadcast %cst_10 : f32 to vector<128x128xf32>
      %c0_11 = arith.constant 0 : index
      %c0_12 = arith.constant 0 : index
      %21 = vector.load %arg5[%c0_11, %c0_12] : memref<128x128xf32, #tpu.memory_space<vmem>>, vector<128x128xf32>
      tpu.vector_store %arg5[%c0_11, %c0_12], %20 {strides = array<i32>} : memref<128x128xf32, #tpu.memory_space<vmem>>, vector<128x128xf32>,
    } else {
    }
    %c0 = arith.constant 0 : index
    %c0_1 = arith.constant 0 : index
    %3 = vector.load %arg2[%c0, %c0_1] : memref<128x1xi32, #tpu.memory_space<vmem>>, vector<128x1xi32>
    %c128_i32 = arith.constant 128 : i32
    %4 = arith.muli %arg1, %c128_i32 : i32
    %5 = tpu.iota {dimensions = array<i32: 1>} : vector<128x128xi32>
    %6 = vector.broadcast %4 : i32 to vector<128x128xi32>
    %7 = arith.addi %6, %5 : vector<128x128xi32>
    %8 = vector.broadcast %3 : vector<128x1xi32> to vector<128x128xi32>
    %9 = arith.cmpi eq, %8, %7 : vector<128x128xi32>
    %10 = arith.extui %9 : vector<128x128xi1> to vector<128x128xi32>
    %11 = arith.sitofp %10 : vector<128x128xi32> to vector<128x128xf32>
    %c0_2 = arith.constant 0 : index
    %c0_3 = arith.constant 0 : index
    %12 = vector.load %arg5[%c0_2, %c0_3] : memref<128x128xf32, #tpu.memory_space<vmem>>, vector<128x128xf32>
    %c0_4 = arith.constant 0 : index
    %c0_5 = arith.constant 0 : index
    %13 = vector.load %arg3[%c0_4, %c0_5] : memref<128x128xf32, #tpu.memory_space<vmem>>, vector<128x128xf32>
    %cst = arith.constant dense<0.000000e+00> : vector<128x128xf32>
    %14 = tpu.matmul %11, %13, %cst {dimension_numbers = #tpu.dot_dimension_numbers<[1], [0], [0], [1], [0, 0, 1, 1], [], []>} : vector<128x128xf32>, vector<128x128xf32>, vector<128x128xf32> -> vector<128x128xf32>
    %15 = arith.addf %12, %14 : vector<128x128xf32>
    %c0_6 = arith.constant 0 : index
    %c0_7 = arith.constant 0 : index
    %16 = vector.load %arg5[%c0_6, %c0_7] : memref<128x128xf32, #tpu.memory_space<vmem>>, vector<128x128xf32>
    tpu.vector_store %arg5[%c0_6, %c0_7], %15 {strides = array<i32>} : memref<128x128xf32, #tpu.memory_space<vmem>>, vector<128x128xf32>,
    %c0_i32_8 = arith.constant 0 : i32
    %17 = arith.cmpi eq, %arg1, %c0_i32_8 : i32
    %18 = arith.extui %17 : i1 to i32
    %c0_i32_9 = arith.constant 0 : i32
    %19 = arith.cmpi ne, %18, %c0_i32_9 : i32
    scf.if %19 {
      %c0_10 = arith.constant 0 : index
      %c0_11 = arith.constant 0 : index
      %20 = vector.load %arg5[%c0_10, %c0_11] : memref<128x128xf32, #tpu.memory_space<vmem>>, vector<128x128xf32>
      %cst_12 = arith.constant 5.65685415 : f32
      %21 = vector.broadcast %cst_12 : f32 to vector<128x128xf32>
      %22 = arith.mulf %20, %21 : vector<128x128xf32>
      %c0_13 = arith.constant 0 : index
      %c0_14 = arith.constant 0 : index
      %23 = vector.load %arg4[%c0_13, %c0_14] : memref<128x128xf32, #tpu.memory_space<vmem>>, vector<128x128xf32>
      tpu.vector_store %arg4[%c0_13, %c0_14], %22 {strides = array<i32>} : memref<128x128xf32, #tpu.memory_space<vmem>>, vector<128x128xf32>,
    } else {
    }
    return
  }
  func.func @transform_0(%arg0: i32, %arg1: i32) -> (i32, i32) {
    %c0_i32 = arith.constant 0 : i32
    %c0_i32_0 = arith.constant 0 : i32
    return %arg0, %c0_i32 : i32, i32
  }
  func.func @transform_1(%arg0: i32, %arg1: i32) -> (i32, i32) {
    %c0_i32 = arith.constant 0 : i32
    %c0_i32_0 = arith.constant 0 : i32
    return %arg1, %c0_i32 : i32, i32
  }
  func.func @transform_2(%arg0: i32, %arg1: i32) -> (i32, i32) {
    %c0_i32 = arith.constant 0 : i32
    %c0_i32_0 = arith.constant 0 : i32
    return %arg0, %c0_i32 : i32, i32
  }
}

</mosaic_0001>

<llo_original>
// kernel: tpu_custom_call.1
$region0: #{tpu_custom_call.1}
  #allocation0 [shape = 'u32[]', space=smem, size = 0x4, offset = 0x4, fixed_abs, tag = 'smem constant byte address 0x4 - core index']
  #allocation1 [shape = 'u32[144,128]{1,0:T(1,128)}', space=vmem, size = 0x12000, scoped, tag = 'internal scratch']
  #allocation2 [shape = 'f32[128,128]{1,0:T(8,128)}', space=vmem, size = 0x10000, scoped, tag = 'scratch operand']
  %s0 = inlined_call_operand.vmem [shape: s32[128,1], index: 0, kind: input, shape index: {}]
  %s1 = inlined_call_operand.vmem [shape: f32[128,128], index: 1, kind: input, shape index: {}]
  %s2 = inlined_call_operand.hbm [shape: f32[128,128], index: 2, kind: output, shape index: {}]
  %s3 = sld [smem:[#allocation0]]
  $region26: #{tpu_custom_call.1} parent=0
    _
  %s5 = ssub.s32 1, %s3
  %s6 = scalar_select 0, %s5, %s3
  $region1: #{tpu_custom_call.1} parent=0
    #allocation3 [shape = 'u8[65536]{0}', space=vmem, size = 0x10000, scoped, tag = 'output window, operand 0, single buffered']
    #allocation4 [shape = 's32[1]{0}', space=sflag, size = 0x4, scoped, tag = 'scoped memory for tpu_custom_call.1']
    %7 = vsyncpa [#allocation4], 0
    // Predicated region
    $region2: #{tpu_custom_call.1} parent=1 // pred_check
      _
    $region3: #{tpu_custom_call.1} parent=1 // pred_check_branch
      %9 = sbr.rel (0) target = $region5
    $region4: #{tpu_custom_call.1} parent=1 // pred_region
      _
    $region5: #{tpu_custom_call.1} parent=1 // pred_fallthru
      _
    // Predicated region
    $region6: #{tpu_custom_call.1} parent=1 // pred_check
      _
    $region7: #{tpu_custom_call.1} parent=1 // pred_check_branch
      %11 = sbr.rel (0) target = $region9
    $region8: #{tpu_custom_call.1} parent=1 // pred_region
      _
    $region9: #{tpu_custom_call.1} parent=1 // pred_fallthru
      _
    %p12 = scmp.eq.s32.totalorder 0, 0
    // Predicated region
    $region10: #{tpu_custom_call.1} parent=1 // pred_check
      %p13 = pneg %p12
    $region11: #{tpu_custom_call.1} parent=1 // pred_check_branch
      %15 = sbr.rel (%p13) target = $region13
    $region12: #{tpu_custom_call.1} parent=1 // pred_region
      %16 = vst [vmem:[#allocation2] sm:$0xff] 0.0
      %17 = vst [vmem:[#allocation2 + $0x8] sm:$0xff] 0.0
      %18 = vst [vmem:[#allocation2 + $0x10] sm:$0xff] 0.0
      %19 = vst [vmem:[#allocation2 + $0x18] sm:$0xff] 0.0
      %20 = vst [vmem:[#allocation2 + $0x20] sm:$0xff] 0.0
      %21 = vst [vmem:[#allocation2 + $0x28] sm:$0xff] 0.0
      %22 = vst [vmem:[#allocation2 + $0x30] sm:$0xff] 0.0
      %23 = vst [vmem:[#allocation2 + $0x38] sm:$0xff] 0.0
      %24 = vst [vmem:[#allocation2 + $0x40] sm:$0xff] 0.0
      %25 = vst [vmem:[#allocation2 + $0x48] sm:$0xff] 0.0
      %26 = vst [vmem:[#allocation2 + $0x50] sm:$0xff] 0.0
      %27 = vst [vmem:[#allocation2 + $0x58] sm:$0xff] 0.0
      %28 = vst [vmem:[#allocation2 + $0x60] sm:$0xff] 0.0
      %29 = vst [vmem:[#allocation2 + $0x68] sm:$0xff] 0.0
      %30 = vst [vmem:[#allocation2 + $0x70] sm:$0xff] 0.0
      %31 = vst [vmem:[#allocation2 + $0x78] sm:$0xff] 0.0
    $region13: #{tpu_custom_call.1} parent=1 // pred_fallthru
      _
    %v32 = vld [vmem:[%s0] sm:$0xff]
    %v33 = vld [vmem:[%s0 + $0x8] sm:$0xff]
    %v34 = vld [vmem:[%s0 + $0x10] sm:$0xff]
    %v35 = vld [vmem:[%s0 + $0x18] sm:$0xff]
    %v36 = vld [vmem:[%s0 + $0x20] sm:$0xff]
    %v37 = vld [vmem:[%s0 + $0x28] sm:$0xff]
    %v38 = vld [vmem:[%s0 + $0x30] sm:$0xff]
    %v39 = vld [vmem:[%s0 + $0x38] sm:$0xff]
    %v40 = vld [vmem:[%s0 + $0x40] sm:$0xff]
    %v41 = vld [vmem:[%s0 + $0x48] sm:$0xff]
    %v42 = vld [vmem:[%s0 + $0x50] sm:$0xff]
    %v43 = vld [vmem:[%s0 + $0x58] sm:$0xff]
    %v44 = vld [vmem:[%s0 + $0x60] sm:$0xff]
    %v45 = vld [vmem:[%s0 + $0x68] sm:$0xff]
    %v46 = vld [vmem:[%s0 + $0x70] sm:$0xff]
    %v47 = vld [vmem:[%s0 + $0x78] sm:$0xff]
    %s48 = smul.u32 0, 128
    %v49 = vlaneseq
    %v50 = vand.u32 %v49, 127
    %v51 = vstv %s48
    %v52 = vadd.s32 %v51, %v50
    %53 = vset.pattern.permute.xlu0 0
    %54 = vperm.xlu0 %53, %v32
    %v55 = vpop.permute.xlu0 %54
    %56 = vset.pattern.permute.xlu0 0
    %57 = vperm.xlu0 %56, %v33
    %v58 = vpop.permute.xlu0 %57
    %59 = vset.pattern.permute.xlu0 0
    %60 = vperm.xlu0 %59, %v34
    %v61 = vpop.permute.xlu0 %60
    %62 = vset.pattern.permute.xlu0 0
    %63 = vperm.xlu0 %62, %v35
    %v64 = vpop.permute.xlu0 %63
    %65 = vset.pattern.permute.xlu0 0
    %66 = vperm.xlu0 %65, %v36
    %v67 = vpop.permute.xlu0 %66
    %68 = vset.pattern.permute.xlu0 0
    %69 = vperm.xlu0 %68, %v37
    %v70 = vpop.permute.xlu0 %69
    %71 = vset.pattern.permute.xlu0 0
    %72 = vperm.xlu0 %71, %v38
    %v73 = vpop.permute.xlu0 %72
    %74 = vset.pattern.permute.xlu0 0
    %75 = vperm.xlu0 %74, %v39
    %v76 = vpop.permute.xlu0 %75
    %77 = vset.pattern.permute.xlu0 0
    %78 = vperm.xlu0 %77, %v40
    %v79 = vpop.permute.xlu0 %78
    %80 = vset.pattern.permute.xlu0 0
    %81 = vperm.xlu0 %80, %v41
    %v82 = vpop.permute.xlu0 %81
    %83 = vset.pattern.permute.xlu0 0
    %84 = vperm.xlu0 %83, %v42
    %v85 = vpop.permute.xlu0 %84
    %86 = vset.pattern.permute.xlu0 0
    %87 = vperm.xlu0 %86, %v43
    %v88 = vpop.permute.xlu0 %87
    %89 = vset.pattern.permute.xlu0 0
    %90 = vperm.xlu0 %89, %v44
    %v91 = vpop.permute.xlu0 %90
    %92 = vset.pattern.permute.xlu0 0
    %93 = vperm.xlu0 %92, %v45
    %v94 = vpop.permute.xlu0 %93
    %95 = vset.pattern.permute.xlu0 0
    %96 = vperm.xlu0 %95, %v46
    %v97 = vpop.permute.xlu0 %96
    %98 = vset.pattern.permute.xlu0 0
    %99 = vperm.xlu0 %98, %v47
    %v100 = vpop.permute.xlu0 %99
    %vm101 = vcmp.eq.s32.totalorder %v55, %v52
    %vm102 = vcmp.eq.s32.totalorder %v58, %v52
    %vm103 = vcmp.eq.s32.totalorder %v61, %v52
    %vm104 = vcmp.eq.s32.totalorder %v64, %v52
    %vm105 = vcmp.eq.s32.totalorder %v67, %v52
    %vm106 = vcmp.eq.s32.totalorder %v70, %v52
    %vm107 = vcmp.eq.s32.totalorder %v73, %v52
    %vm108 = vcmp.eq.s32.totalorder %v76, %v52
    %vm109 = vcmp.eq.s32.totalorder %v79, %v52
    %vm110 = vcmp.eq.s32.totalorder %v82, %v52
    %vm111 = vcmp.eq.s32.totalorder %v85, %v52
    %vm112 = vcmp.eq.s32.totalorder %v88, %v52
    %vm113 = vcmp.eq.s32.totalorder %v91, %v52
    %vm114 = vcmp.eq.s32.totalorder %v94, %v52
    %vm115 = vcmp.eq.s32.totalorder %v97, %v52
    %vm116 = vcmp.eq.s32.totalorder %v100, %v52
    %v117 = vsel %vm101, 1, 0
    %v118 = vsel %vm102, 1, 0
    %v119 = vsel %vm103, 1, 0
    %v120 = vsel %vm104, 1, 0
    %v121 = vsel %vm105, 1, 0
    %v122 = vsel %vm106, 1, 0
    %v123 = vsel %vm107, 1, 0
    %v124 = vsel %vm108, 1, 0
    %v125 = vsel %vm109, 1, 0
    %v126 = vsel %vm110, 1, 0
    %v127 = vsel %vm111, 1, 0
    %v128 = vsel %vm112, 1, 0
    %v129 = vsel %vm113, 1, 0
    %v130 = vsel %vm114, 1, 0
    %v131 = vsel %vm115, 1, 0
    %v132 = vsel %vm116, 1, 0
    %v133 = vcvt.s32.f32 %v117
    %v134 = vcvt.s32.f32 %v118
    %v135 = vcvt.s32.f32 %v119
    %v136 = vcvt.s32.f32 %v120
    %v137 = vcvt.s32.f32 %v121
    %v138 = vcvt.s32.f32 %v122
    %v139 = vcvt.s32.f32 %v123
    %v140 = vcvt.s32.f32 %v124
    %v141 = vcvt.s32.f32 %v125
    %v142 = vcvt.s32.f32 %v126
    %v143 = vcvt.s32.f32 %v127
    %v144 = vcvt.s32.f32 %v128
    %v145 = vcvt.s32.f32 %v129
    %v146 = vcvt.s32.f32 %v130
    %v147 = vcvt.s32.f32 %v131
    %v148 = vcvt.s32.f32 %v132
    %v149 = vld [vmem:[#allocation2] sm:$0xff]
    %v150 = vld [vmem:[#allocation2 + $0x8] sm:$0xff]
    %v151 = vld [vmem:[#allocation2 + $0x10] sm:$0xff]
    %v152 = vld [vmem:[#allocation2 + $0x18] sm:$0xff]
    %v153 = vld [vmem:[#allocation2 + $0x20] sm:$0xff]
    %v154 = vld [vmem:[#allocation2 + $0x28] sm:$0xff]
    %v155 = vld [vmem:[#allocation2 + $0x30] sm:$0xff]
    %v156 = vld [vmem:[#allocation2 + $0x38] sm:$0xff]
    %v157 = vld [vmem:[#allocation2 + $0x40] sm:$0xff]
    %v158 = vld [vmem:[#allocation2 + $0x48] sm:$0xff]
    %v159 = vld [vmem:[#allocation2 + $0x50] sm:$0xff]
    %v160 = vld [vmem:[#allocation2 + $0x58] sm:$0xff]
    %v161 = vld [vmem:[#allocation2 + $0x60] sm:$0xff]
    %v162 = vld [vmem:[#allocation2 + $0x68] sm:$0xff]
    %v163 = vld [vmem:[#allocation2 + $0x70] sm:$0xff]
    %v164 = vld [vmem:[#allocation2 + $0x78] sm:$0xff]
    %v165 = vld [vmem:[%s1] sm:$0xff]
    %v166 = vld [vmem:[%s1 + $0x8] sm:$0xff]
    %v167 = vld [vmem:[%s1 + $0x10] sm:$0xff]
    %v168 = vld [vmem:[%s1 + $0x18] sm:$0xff]
    %v169 = vld [vmem:[%s1 + $0x20] sm:$0xff]
    %v170 = vld [vmem:[%s1 + $0x28] sm:$0xff]
    %v171 = vld [vmem:[%s1 + $0x30] sm:$0xff]
    %v172 = vld [vmem:[%s1 + $0x38] sm:$0xff]
    %v173 = vld [vmem:[%s1 + $0x40] sm:$0xff]
    %v174 = vld [vmem:[%s1 + $0x48] sm:$0xff]
    %v175 = vld [vmem:[%s1 + $0x50] sm:$0xff]
    %v176 = vld [vmem:[%s1 + $0x58] sm:$0xff]
    %v177 = vld [vmem:[%s1 + $0x60] sm:$0xff]
    %v178 = vld [vmem:[%s1 + $0x68] sm:$0xff]
    %v179 = vld [vmem:[%s1 + $0x70] sm:$0xff]
    %v180 = vld [vmem:[%s1 + $0x78] sm:$0xff]
    %181 = vmatprep.subr.mxu0 0.0
    %182 = vmatpush1.msra.mxu0 %v165
    %183 = vmatprep.subr.mxu0 0.0
    %184 = vmatpush1.msra.mxu0 %v166
    %185 = vmatprep.subr.mxu0 0.0
    %186 = vmatpush1.msra.mxu0 %v167
    %187 = vmatprep.subr.mxu0 0.0
    %188 = vmatpush1.msra.mxu0 %v168
    %189 = vmatprep.subr.mxu0 0.0
    %190 = vmatpush1.msra.mxu0 %v169
    %191 = vmatprep.subr.mxu0 0.0
    %192 = vmatpush1.msra.mxu0 %v170
    %193 = vmatprep.subr.mxu0 0.0
    %194 = vmatpush1.msra.mxu0 %v171
    %195 = vmatprep.subr.mxu0 0.0
    %196 = vmatpush1.msra.mxu0 %v172
    %197 = vmatprep.subr.mxu0 0.0
    %198 = vmatpush1.msra.mxu0 %v173
    %199 = vmatprep.subr.mxu0 0.0
    %200 = vmatpush1.msra.mxu0 %v174
    %201 = vmatprep.subr.mxu0 0.0
    %202 = vmatpush1.msra.mxu0 %v175
    %203 = vmatprep.subr.mxu0 0.0
    %204 = vmatpush1.msra.mxu0 %v176
    %205 = vmatprep.subr.mxu0 0.0
    %206 = vmatpush1.msra.mxu0 %v177
    %207 = vmatprep.subr.mxu0 0.0
    %208 = vmatpush1.msra.mxu0 %v178
    %209 = vmatprep.subr.mxu0 0.0
    %210 = vmatpush1.msra.mxu0 %v179
    %211 = vmatprep.subr.mxu0 0.0
    %212 = vmatpush1.msra.mxu0 %v180
    %213 = vmatprep.subr.mxu0 0.0
    %214 = vmatpush1.msra.mxu0 0.0
    %215 = vmatprep.subr.mxu0 0.0
    %216 = vmatpush1.msra.mxu0 0.0
    %217 = vmatprep.subr.mxu0 0.0
    %218 = vmatpush1.msra.mxu0 0.0
    %219 = vmatprep.subr.mxu0 0.0
    %220 = vmatpush1.msra.mxu0 0.0
    %221 = vmatprep.subr.mxu0 0.0
    %222 = vmatpush1.msra.mxu0 0.0
    %223 = vmatprep.subr.mxu0 0.0
    %224 = vmatpush1.msra.mxu0 0.0
    %225 = vmatprep.subr.mxu0 0.0
    %226 = vmatpush1.msra.mxu0 0.0
    %227 = vmatprep.subr.mxu0 0.0
    %228 = vmatpush1.msra.mxu0 0.0
    %229 = vmatprep.subr.mxu0 0.0
    %230 = vmatpush1.msra.mxu0 0.0
    %231 = vmatprep.subr.mxu0 0.0
    %232 = vmatpush1.msra.mxu0 0.0
    %233 = vmatprep.subr.mxu0 0.0
    %234 = vmatpush1.msra.mxu0 0.0
    %235 = vmatprep.subr.mxu0 0.0
    %236 = vmatpush1.msra.mxu0 0.0
    %237 = vmatprep.subr.mxu0 0.0
    %238 = vmatpush1.msra.mxu0 0.0
    %239 = vmatprep.subr.mxu0 0.0
    %240 = vmatpush1.msra.mxu0 0.0
    %241 = vmatprep.subr.mxu0 0.0
    %242 = vmatpush1.msra.mxu0 0.0
    %243 = vmatprep.subr.mxu0 0.0
    %244 = vmatpush1.msra.mxu0 0.0
    %245 = vmatprep.mubr.f32.mxu0 0.0
    %246 = vmatmul.mubr.f32.gmra.mrb[0].mxu0 %v133
    %v247 = vpop.f32.mrb[0].mxu0
    %v248 = vadd.f32 0.0, %v247
    %v249 = vpop.f32.mrb[0].mxu0
    %250 = vmatprep.mubr.f32.mxu0 0.0
    %251 = vmatmul.mubr.f32.gmra.mrb[0].mxu0 %v134
    %v252 = vpop.f32.mrb[0].mxu0
    %v253 = vadd.f32 0.0, %v252
    %v254 = vpop.f32.mrb[0].mxu0
    %255 = vmatprep.mubr.f32.mxu0 0.0
    %256 = vmatmul.mubr.f32.gmra.mrb[0].mxu0 %v135
    %v257 = vpop.f32.mrb[0].mxu0
    %v258 = vadd.f32 0.0, %v257
    %v259 = vpop.f32.mrb[0].mxu0
    %260 = vmatprep.mubr.f32.mxu0 0.0
    %261 = vmatmul.mubr.f32.gmra.mrb[0].mxu0 %v136
    %v262 = vpop.f32.mrb[0].mxu0
    %v263 = vadd.f32 0.0, %v262
    %v264 = vpop.f32.mrb[0].mxu0
    %265 = vmatprep.mubr.f32.mxu0 0.0
    %266 = vmatmul.mubr.f32.gmra.mrb[0].mxu0 %v137
    %v267 = vpop.f32.mrb[0].mxu0
    %v268 = vadd.f32 0.0, %v267
    %v269 = vpop.f32.mrb[0].mxu0
    %270 = vmatprep.mubr.f32.mxu0 0.0
    %271 = vmatmul.mubr.f32.gmra.mrb[0].mxu0 %v138
    %v272 = vpop.f32.mrb[0].mxu0
    %v273 = vadd.f32 0.0, %v272
    %v274 = vpop.f32.mrb[0].mxu0
    %275 = vmatprep.mubr.f32.mxu0 0.0
    %276 = vmatmul.mubr.f32.gmra.mrb[0].mxu0 %v139
    %v277 = vpop.f32.mrb[0].mxu0
    %v278 = vadd.f32 0.0, %v277
    %v279 = vpop.f32.mrb[0].mxu0
    %280 = vmatprep.mubr.f32.mxu0 0.0
    %281 = vmatmul.mubr.f32.gmra.mrb[0].mxu0 %v140
    %v282 = vpop.f32.mrb[0].mxu0
    %v283 = vadd.f32 0.0, %v282
    %v284 = vpop.f32.mrb[0].mxu0
    %285 = vmatprep.mubr.f32.mxu0 0.0
    %286 = vmatmul.mubr.f32.gmra.mrb[0].mxu0 %v141
    %v287 = vpop.f32.mrb[0].mxu0
    %v288 = vadd.f32 0.0, %v287
    %v289 = vpop.f32.mrb[0].mxu0
    %290 = vmatprep.mubr.f32.mxu0 0.0
    %291 = vmatmul.mubr.f32.gmra.mrb[0].mxu0 %v142
    %v292 = vpop.f32.mrb[0].mxu0
    %v293 = vadd.f32 0.0, %v292
    %v294 = vpop.f32.mrb[0].mxu0
    %295 = vmatprep.mubr.f32.mxu0 0.0
    %296 = vmatmul.mubr.f32.gmra.mrb[0].mxu0 %v143
    %v297 = vpop.f32.mrb[0].mxu0
    %v298 = vadd.f32 0.0, %v297
    %v299 = vpop.f32.mrb[0].mxu0
    %300 = vmatprep.mubr.f32.mxu0 0.0
    %301 = vmatmul.mubr.f32.gmra.mrb[0].mxu0 %v144
    %v302 = vpop.f32.mrb[0].mxu0
    %v303 = vadd.f32 0.0, %v302
    %v304 = vpop.f32.mrb[0].mxu0
    %305 = vmatprep.mubr.f32.mxu0 0.0
    %306 = vmatmul.mubr.f32.gmra.mrb[0].mxu0 %v145
    %v307 = vpop.f32.mrb[0].mxu0
    %v308 = vadd.f32 0.0, %v307
    %v309 = vpop.f32.mrb[0].mxu0
    %310 = vmatprep.mubr.f32.mxu0 0.0
    %311 = vmatmul.mubr.f32.gmra.mrb[0].mxu0 %v146
    %v312 = vpop.f32.mrb[0].mxu0
    %v313 = vadd.f32 0.0, %v312
    %v314 = vpop.f32.mrb[0].mxu0
    %315 = vmatprep.mubr.f32.mxu0 0.0
    %316 = vmatmul.mubr.f32.gmra.mrb[0].mxu0 %v147
    %v317 = vpop.f32.mrb[0].mxu0
    %v318 = vadd.f32 0.0, %v317
    %v319 = vpop.f32.mrb[0].mxu0
    %320 = vmatprep.mubr.f32.mxu0 0.0
    %321 = vmatmul.mubr.f32.gmra.mrb[0].mxu0 %v148
    %v322 = vpop.f32.mrb[0].mxu0
    %v323 = vadd.f32 0.0, %v322
    %v324 = vpop.f32.mrb[0].mxu0
    %325 = vdwg.mxu0
    %v326 = vadd.f32 %v149, %v248
    %v327 = vadd.f32 %v150, %v253
    %v328 = vadd.f32 %v151, %v258
    %v329 = vadd.f32 %v152, %v263
    %v330 = vadd.f32 %v153, %v268
    %v331 = vadd.f32 %v154, %v273
    %v332 = vadd.f32 %v155, %v278
    %v333 = vadd.f32 %v156, %v283
    %v334 = vadd.f32 %v157, %v288
    %v335 = vadd.f32 %v158, %v293
    %v336 = vadd.f32 %v159, %v298
    %v337 = vadd.f32 %v160, %v303
    %v338 = vadd.f32 %v161, %v308
    %v339 = vadd.f32 %v162, %v313
    %v340 = vadd.f32 %v163, %v318
    %v341 = vadd.f32 %v164, %v323
    %342 = vst [vmem:[#allocation2] sm:$0xff] %v326
    %343 = vst [vmem:[#allocation2 + $0x8] sm:$0xff] %v327
    %344 = vst [vmem:[#allocation2 + $0x10] sm:$0xff] %v328
    %345 = vst [vmem:[#allocation2 + $0x18] sm:$0xff] %v329
    %346 = vst [vmem:[#allocation2 + $0x20] sm:$0xff] %v330
    %347 = vst [vmem:[#allocation2 + $0x28] sm:$0xff] %v331
    %348 = vst [vmem:[#allocation2 + $0x30] sm:$0xff] %v332
    %349 = vst [vmem:[#allocation2 + $0x38] sm:$0xff] %v333
    %350 = vst [vmem:[#allocation2 + $0x40] sm:$0xff] %v334
    %351 = vst [vmem:[#allocation2 + $0x48] sm:$0xff] %v335
    %352 = vst [vmem:[#allocation2 + $0x50] sm:$0xff] %v336
    %353 = vst [vmem:[#allocation2 + $0x58] sm:$0xff] %v337
    %354 = vst [vmem:[#allocation2 + $0x60] sm:$0xff] %v338
    %355 = vst [vmem:[#allocation2 + $0x68] sm:$0xff] %v339
    %356 = vst [vmem:[#allocation2 + $0x70] sm:$0xff] %v340
    %357 = vst [vmem:[#allocation2 + $0x78] sm:$0xff] %v341
    // Predicated region
    $region14: #{tpu_custom_call.1} parent=1 // pred_check
      %p358 = pneg %p12
    $region15: #{tpu_custom_call.1} parent=1 // pred_check_branch
      %360 = sbr.rel (%p358) target = $region17
    $region16: #{tpu_custom_call.1} parent=1 // pred_region
      %v361 = vld [vmem:[#allocation2] sm:$0xff]
      %v362 = vld [vmem:[#allocation2 + $0x8] sm:$0xff]
      %v363 = vld [vmem:[#allocation2 + $0x10] sm:$0xff]
      %v364 = vld [vmem:[#allocation2 + $0x18] sm:$0xff]
      %v365 = vld [vmem:[#allocation2 + $0x20] sm:$0xff]
      %v366 = vld [vmem:[#allocation2 + $0x28] sm:$0xff]
      %v367 = vld [vmem:[#allocation2 + $0x30] sm:$0xff]
      %v368 = vld [vmem:[#allocation2 + $0x38] sm:$0xff]
      %v369 = vld [vmem:[#allocation2 + $0x40] sm:$0xff]
      %v370 = vld [vmem:[#allocation2 + $0x48] sm:$0xff]
      %v371 = vld [vmem:[#allocation2 + $0x50] sm:$0xff]
      %v372 = vld [vmem:[#allocation2 + $0x58] sm:$0xff]
      %v373 = vld [vmem:[#allocation2 + $0x60] sm:$0xff]
      %v374 = vld [vmem:[#allocation2 + $0x68] sm:$0xff]
      %v375 = vld [vmem:[#allocation2 + $0x70] sm:$0xff]
      %v376 = vld [vmem:[#allocation2 + $0x78] sm:$0xff]
      %v377 = vmul.f32 %v361, 5.656854
      %v378 = vmul.f32 %v362, 5.656854
      %v379 = vmul.f32 %v363, 5.656854
      %v380 = vmul.f32 %v364, 5.656854
      %v381 = vmul.f32 %v365, 5.656854
      %v382 = vmul.f32 %v366, 5.656854
      %v383 = vmul.f32 %v367, 5.656854
      %v384 = vmul.f32 %v368, 5.656854
      %v385 = vmul.f32 %v369, 5.656854
      %v386 = vmul.f32 %v370, 5.656854
      %v387 = vmul.f32 %v371, 5.656854
      %v388 = vmul.f32 %v372, 5.656854
      %v389 = vmul.f32 %v373, 5.656854
      %v390 = vmul.f32 %v374, 5.656854
      %v391 = vmul.f32 %v375, 5.656854
      %v392 = vmul.f32 %v376, 5.656854
      %393 = vst [vmem:[#allocation3] sm:$0xff] %v377
      %394 = vst [vmem:[#allocation3 + $0x8] sm:$0xff] %v378
      %395 = vst [vmem:[#allocation3 + $0x10] sm:$0xff] %v379
      %396 = vst [vmem:[#allocation3 + $0x18] sm:$0xff] %v380
      %397 = vst [vmem:[#allocation3 + $0x20] sm:$0xff] %v381
      %398 = vst [vmem:[#allocation3 + $0x28] sm:$0xff] %v382
      %399 = vst [vmem:[#allocation3 + $0x30] sm:$0xff] %v383
      %400 = vst [vmem:[#allocation3 + $0x38] sm:$0xff] %v384
      %401 = vst [vmem:[#allocation3 + $0x40] sm:$0xff] %v385
      %402 = vst [vmem:[#allocation3 + $0x48] sm:$0xff] %v386
      %403 = vst [vmem:[#allocation3 + $0x50] sm:$0xff] %v387
      %404 = vst [vmem:[#allocation3 + $0x58] sm:$0xff] %v388
      %405 = vst [vmem:[#allocation3 + $0x60] sm:$0xff] %v389
      %406 = vst [vmem:[#allocation3 + $0x68] sm:$0xff] %v390
      %407 = vst [vmem:[#allocation3 + $0x70] sm:$0xff] %v391
      %408 = vst [vmem:[#allocation3 + $0x78] sm:$0xff] %v392
    $region17: #{tpu_custom_call.1} parent=1 // pred_fallthru
      _
    // Predicated region
    $region18: #{tpu_custom_call.1} parent=1 // pred_check
      _
    $region19: #{tpu_custom_call.1} parent=1 // pred_check_branch
      %410 = sbr.rel (0) target = $region21
    $region20: #{tpu_custom_call.1} parent=1 // pred_region
      %s412 = ssub.s32 2048, 2048
      %413 = vsyncadd [#allocation4], %s412
      %s414 = sshll.u32 [#allocation3], 4
      %s415 = int_to_ptr.vmem [resolvable:$true] %s414
      %420 = dma.vmem_to_hbm [thread:$0]  %s415, 2048, %s2, [#allocation4], 128, 128, 8
    $region21: #{tpu_custom_call.1} parent=1 // pred_fallthru
      _
    // Predicated region
    $region22: #{tpu_custom_call.1} parent=1 // pred_check
      _
    $region23: #{tpu_custom_call.1} parent=1 // pred_check_branch
      %422 = sbr.rel (0) target = $region25
    $region24: #{tpu_custom_call.1} parent=1 // pred_region
      %423 = dma.done [#allocation4], 2048
    $region25: #{tpu_custom_call.1} parent=1 // pred_fallthru
      _
    %424 = vsyncpa [#allocation4], 1

</llo_original>
